<compile_context>
chip_gen: v6e
topology: v6e:2x2x1
jax: 0.10.0
libtpu: 0.0.40
codegen_flags: <defaults>
</compile_context>

<pallas_src>
import functools

import jax
import jax.numpy as jnp
from jax import lax
from jax.experimental import pallas as pl
from jax.experimental.pallas import tpu as pltpu


def _round_up(n, m):
    return (n + m - 1) // m * m


def pack_params(w_lin, b_lin, rand_w):
    """Pack [linear.weight.T ; rand_weight ; bias-row] into one (rows, D) array.

    Row offsets are 8-aligned so the in-kernel static slices are sublane-tile
    aligned views. Done once, hoisted out of the call path.
    """
    D = w_lin.shape[0]
    rw_off = _round_up(D, 8)
    b_off = 2 * rw_off
    rows = _round_up(b_off + 1, 8)
    params = jnp.zeros((rows, D), jnp.float32)
    params = params.at[0:D, :].set(w_lin.T)                 # pre-transposed Linear weight
    params = params.at[rw_off:rw_off + D, :].set(rand_w)    # fixed random weight
    params = params.at[b_off, :].set(b_lin)                 # bias as a row
    return params


def _fixed_hidden_mlp_kernel(x_ref, p_ref, o_ref, *, d, rw_off, b_off):
    x = x_ref[...]                              # (B, D) f32
    w = p_ref[0:d, :]                           # (D, D) == linear.weight.T
    rw = p_ref[rw_off:rw_off + d, :]            # (D, D) fixed random weight
    b = p_ref[b_off:b_off + 1, :]               # (1, D) bias row

    # X = self.linear(X)
    h = jnp.dot(x, w, preferred_element_type=jnp.float32) + b
    # X = relu(X @ rand_weight + 1)
    h = jnp.maximum(jnp.dot(h, rw, preferred_element_type=jnp.float32) + 1.0, 0.0)
    # X = self.linear(X)   (same shared weights/bias)
    h = jnp.dot(h, w, preferred_element_type=jnp.float32) + b

    # while X.abs().sum() > 1: X /= 2 ; return X.sum()
    # Branch-free: the loop halves exactly k = max(0, ceil(log2(s0))) times,
    # and X.sum() after k exact halvings equals sum(X) * 2^-k exactly
    # (power-of-two scaling commutes with round-to-nearest; only the
    # subnormal regime — unreachable here — would break this).
    s0 = jnp.sum(jnp.abs(h)).reshape(1, 1)      # (1,1) f32, >= 0
    t0 = jnp.sum(h).reshape(1, 1)               # (1,1) f32

    bits = pltpu.bitcast(s0, jnp.int32)         # reinterpret f32 bits
    biased_exp = (bits >> 23) & 0xFF
    mant = bits & 0x7FFFFF
    k = jnp.maximum(0, (biased_exp - 127) + (mant != 0).astype(jnp.int32))
    scale = pltpu.bitcast((127 - k) << 23, jnp.float32)   # == 2^-k exactly
    o_ref[...] = t0 * scale


def fixed_hidden_mlp(x, params):
    """x: (N, B, D) batch of independent problems, or a single (B, D) problem.
    params: packed parameter array from pack_params()."""
    squeeze = x.ndim == 2
    if squeeze:
        x = x[None]
    N, B, D = x.shape
    R = params.shape[0]
    rw_off = _round_up(D, 8)
    b_off = 2 * rw_off

    kernel = functools.partial(
        _fixed_hidden_mlp_kernel, d=D, rw_off=rw_off, b_off=b_off)

    out = pl.pallas_call(
        kernel,
        out_shape=jax.ShapeDtypeStruct((N, 1, 1), jnp.float32),
        grid=(N,),
        in_specs=[
            pl.BlockSpec((None, B, D), lambda n: (n, 0, 0)),   # one problem per step
            pl.BlockSpec((R, D), lambda n: (0, 0)),            # params: resident, 1 DMA
        ],
        out_specs=pl.BlockSpec((None, 1, 1), lambda n: (n, 0, 0)),
        compiler_params=pltpu.CompilerParams(
            dimension_semantics=("parallel",)),
    )(x, params)

    out = out[:, 0, 0]
    return out[0] if squeeze else out


def fixed_hidden_mlp_ref(x, w_lin, b_lin, rand_w):
    h = x @ w_lin.T + b_lin
    h = jnp.maximum(h @ rand_w + 1.0, 0.0)
    h = h @ w_lin.T + b_lin

    def cond(c):
        return jnp.sum(jnp.abs(c)) > 1.0

    h = lax.while_loop(cond, lambda c: c * 0.5, h)
    return jnp.sum(h)


if __name__ == "__main__":
    B, D = 2, 20          # matches torch.rand(2, 20) and nn.Linear(20, 20)
    N = 4                 # batch of independent forwards, amortizes pallas_call overhead

    key = jax.random.PRNGKey(0)
    kx, kr, kw, kb = jax.random.split(key, 4)

    # Deterministic synthetic parameters (shapes from __init__).
    x = jax.random.uniform(kx, (N, B, D), dtype=jnp.float32)          # N batches of X ~ U[0,1)
    rand_w = jax.random.uniform(kr, (D, D), dtype=jnp.float32)        # torch.rand((20,20))
    bound = float(D) ** -0.5                                          # nn.Linear default init range
    w_lin = jax.random.uniform(kw, (D, D), minval=-bound, maxval=bound, dtype=jnp.float32)
    b_lin = jax.random.uniform(kb, (D,), minval=-bound, maxval=bound, dtype=jnp.float32)

    # Layout prep hoisted out of the call: pack/transpose parameters once.
    params = pack_params(w_lin, b_lin, rand_w)

    out = fixed_hidden_mlp(x, params)            # (N,) scalars
    out = jax.block_until_ready(out)

    ref = jnp.stack([fixed_hidden_mlp_ref(x[i], w_lin, b_lin, rand_w) for i in range(N)])
    assert jnp.allclose(out, ref, rtol=1e-5, atol=1e-5), (out, ref)

    print("KERNEL_OK")
</pallas_src>

<mosaic_0001>
module attributes {stable_mosaic.version = 11 : i64} {
  func.func @_fixed_hidden_mlp_kernel(%arg0: i32, %arg1: memref<1x2x20xf32, #tpu.memory_space<vmem>>, %arg2: memref<56x20xf32, #tpu.memory_space<vmem>>, %arg3: memref<1x1x1xf32, #tpu.memory_space<vmem>>) attributes {dimension_semantics = [#tpu.dimension_semantics<parallel>], iteration_bounds = array<i64: 4>, scalar_prefetch = 0 : i64, scratch_operands = 0 : i64, tpu.core_type = #tpu.core_type<tc>, window_params = [{transform_indices = @transform_0, window_bounds = array<i64: 1, 2, 20>}, {pipeline_mode = #tpu.pipeline_mode<synchronous>, transform_indices = @transform_1, window_bounds = array<i64: 56, 20>}, {transform_indices = @transform_2, window_bounds = array<i64: 1, 1, 1>}]} {
    %c0 = arith.constant 0 : index
    %c0_0 = arith.constant 0 : index
    %c0_1 = arith.constant 0 : index
    %0 = vector.load %arg1[%c0, %c0_0, %c0_1] : memref<1x2x20xf32, #tpu.memory_space<vmem>>, vector<1x2x20xf32>
    %1 = vector.shape_cast %0 : vector<1x2x20xf32> to vector<2x20xf32>
    %c0_2 = arith.constant 0 : index
    %c0_3 = arith.constant 0 : index
    %2 = vector.load %arg2[%c0_2, %c0_3] : memref<56x20xf32, #tpu.memory_space<vmem>>, vector<20x20xf32>
    %c24 = arith.constant 24 : index
    %c0_4 = arith.constant 0 : index
    %3 = vector.load %arg2[%c24, %c0_4] : memref<56x20xf32, #tpu.memory_space<vmem>>, vector<20x20xf32>
    %c48 = arith.constant 48 : index
    %c0_5 = arith.constant 0 : index
    %4 = vector.load %arg2[%c48, %c0_5] : memref<56x20xf32, #tpu.memory_space<vmem>>, vector<1x20xf32>
    %cst = arith.constant dense<0.000000e+00> : vector<2x20xf32>
    %5 = tpu.matmul %1, %2, %cst {dimension_numbers = #tpu.dot_dimension_numbers<[1], [0], [0], [1], [0, 0, 1, 1], [], []>} : vector<2x20xf32>, vector<20x20xf32>, vector<2x20xf32> -> vector<2x20xf32>
    %6 = vector.broadcast %4 : vector<1x20xf32> to vector<2x20xf32>
    %7 = arith.addf %5, %6 : vector<2x20xf32>
    %cst_6 = arith.constant dense<0.000000e+00> : vector<2x20xf32>
    %8 = tpu.matmul %7, %3, %cst_6 {dimension_numbers = #tpu.dot_dimension_numbers<[1], [0], [0], [1], [0, 0, 1, 1], [], []>} : vector<2x20xf32>, vector<20x20xf32>, vector<2x20xf32> -> vector<2x20xf32>
    %cst_7 = arith.constant 1.000000e+00 : f32
    %9 = vector.broadcast %cst_7 : f32 to vector<2x20xf32>
    %10 = arith.addf %8, %9 : vector<2x20xf32>
    %cst_8 = arith.constant 0.000000e+00 : f32
    %11 = vector.broadcast %cst_8 : f32 to vector<2x20xf32>
    %12 = arith.maximumf %10, %11 : vector<2x20xf32>
    %cst_9 = arith.constant dense<0.000000e+00> : vector<2x20xf32>
    %13 = tpu.matmul %12, %2, %cst_9 {dimension_numbers = #tpu.dot_dimension_numbers<[1], [0], [0], [1], [0, 0, 1, 1], [], []>} : vector<2x20xf32>, vector<20x20xf32>, vector<2x20xf32> -> vector<2x20xf32>
    %14 = vector.broadcast %4 : vector<1x20xf32> to vector<2x20xf32>
    %15 = arith.addf %13, %14 : vector<2x20xf32>
    %16 = math.absf %15 : vector<2x20xf32>
    %17 = vector.shape_cast %16 : vector<2x20xf32> to vector<1x2x20xf32>
    %cst_10 = arith.constant dense<0.000000e+00> : vector<1xf32>
    %18 = vector.multi_reduction <add>, %17, %cst_10 [1, 2] : vector<1x2x20xf32> to vector<1xf32>
    %19 = vector.shape_cast %18 : vector<1xf32> to vector<1x1x1xf32>
    %20 = vector.extract %19[0, 0, 0] : f32 from vector<1x1x1xf32>
    %21 = vector.broadcast %20 : f32 to vector<1x1xf32>
    %22 = vector.shape_cast %15 : vector<2x20xf32> to vector<1x2x20xf32>
    %cst_11 = arith.constant dense<0.000000e+00> : vector<1xf32>
    %23 = vector.multi_reduction <add>, %22, %cst_11 [1, 2] : vector<1x2x20xf32> to vector<1xf32>
    %24 = vector.shape_cast %23 : vector<1xf32> to vector<1x1x1xf32>
    %25 = vector.extract %24[0, 0, 0] : f32 from vector<1x1x1xf32>
    %26 = vector.broadcast %25 : f32 to vector<1x1xf32>
    %27 = tpu.bitcast %21 : vector<1x1xf32> -> vector<1x1xi32>
    %c23_i32 = arith.constant 23 : i32
    %28 = vector.broadcast %c23_i32 : i32 to vector<1x1xi32>
    %29 = arith.shrsi %27, %28 : vector<1x1xi32>
    %c255_i32 = arith.constant 255 : i32
    %30 = vector.broadcast %c255_i32 : i32 to vector<1x1xi32>
    %31 = arith.andi %29, %30 : vector<1x1xi32>
    %c8388607_i32 = arith.constant 8388607 : i32
    %32 = vector.broadcast %c8388607_i32 : i32 to vector<1x1xi32>
    %33 = arith.andi %27, %32 : vector<1x1xi32>
    %c127_i32 = arith.constant 127 : i32
    %34 = vector.broadcast %c127_i32 : i32 to vector<1x1xi32>
    %35 = arith.subi %31, %34 : vector<1x1xi32>
    %c0_i32 = arith.constant 0 : i32
    %36 = vector.broadcast %c0_i32 : i32 to vector<1x1xi32>
    %37 = arith.cmpi ne, %33, %36 : vector<1x1xi32>
    %38 = arith.extui %37 : vector<1x1xi1> to vector<1x1xi32>
    %39 = arith.addi %35, %38 : vector<1x1xi32>
    %c0_i32_12 = arith.constant 0 : i32
    %40 = vector.broadcast %c0_i32_12 : i32 to vector<1x1xi32>
    %41 = arith.maxsi %40, %39 : vector<1x1xi32>
    %c127_i32_13 = arith.constant 127 : i32
    %42 = vector.broadcast %c127_i32_13 : i32 to vector<1x1xi32>
    %43 = arith.subi %42, %41 : vector<1x1xi32>
    %c23_i32_14 = arith.constant 23 : i32
    %44 = vector.broadcast %c23_i32_14 : i32 to vector<1x1xi32>
    %45 = arith.shli %43, %44 : vector<1x1xi32>
    %46 = tpu.bitcast %45 : vector<1x1xi32> -> vector<1x1xf32>
    %47 = arith.mulf %26, %46 : vector<1x1xf32>
    %c0_15 = arith.constant 0 : index
    %c0_16 = arith.constant 0 : index
    %c0_17 = arith.constant 0 : index
    %48 = vector.load %arg3[%c0_15, %c0_16, %c0_17] : memref<1x1x1xf32, #tpu.memory_space<vmem>>, vector<1x1x1xf32>
    %49 = vector.shape_cast %48 : vector<1x1x1xf32> to vector<1x1xf32>
    %50 = vector.shape_cast %47 : vector<1x1xf32> to vector<1x1x1xf32>
    tpu.vector_store %arg3[%c0_15, %c0_16, %c0_17], %50 {strides = array<i32>} : memref<1x1x1xf32, #tpu.memory_space<vmem>>, vector<1x1x1xf32>,
    return
  }
  func.func @transform_0(%arg0: i32) -> (i32, i32, i32) {
    %c0_i32 = arith.constant 0 : i32
    %c0_i32_0 = arith.constant 0 : i32
    %c0_i32_1 = arith.constant 0 : i32
    return %arg0, %c0_i32, %c0_i32_0 : i32, i32, i32
  }
  func.func @transform_1(%arg0: i32) -> (i32, i32) {
    %c0_i32 = arith.constant 0 : i32
    %c0_i32_0 = arith.constant 0 : i32
    %c0_i32_1 = arith.constant 0 : i32
    return %c0_i32, %c0_i32_0 : i32, i32
  }
  func.func @transform_2(%arg0: i32) -> (i32, i32, i32) {
    %c0_i32 = arith.constant 0 : i32
    %c0_i32_0 = arith.constant 0 : i32
    %c0_i32_1 = arith.constant 0 : i32
    return %arg0, %c0_i32, %c0_i32_0 : i32, i32, i32
  }
}

</mosaic_0001>

<llo_original>
// kernel: tpu_custom_call.1
$region0: #{tpu_custom_call.1}
  #allocation0 [shape = 'u32[]', space=smem, size = 0x4, offset = 0x4, fixed_abs, tag = 'smem constant byte address 0x4 - core index']
  #allocation1 [shape = 'u32[144,128]{1,0:T(1,128)}', space=vmem, size = 0x12000, scoped, tag = 'internal scratch']
  %s0 = inlined_call_operand.vmem [shape: f32[4,2,20], index: 0, kind: input, shape index: {}]
  %s1 = inlined_call_operand.vmem [shape: f32[56,20], index: 1, kind: input, shape index: {}]
  %s2 = inlined_call_operand.vmem [shape: f32[4,1,1], index: 2, kind: output, shape index: {}]
  %s3 = sld [smem:[#allocation0]]
  $region41: #{tpu_custom_call.1} parent=0
    _
  %s5 = ssub.s32 1, %s3
  %s6 = scalar_select 0, %s5, %s3
  loop: start=0, step=1, limit=6
  $region2: #{tpu_custom_call.1} parent=0 // loop_pre_header
    _
  $region3: #{tpu_custom_call.1} parent=0 // loop_header
    %s8 = sphi 0, %s12
    %p9 = scmp.ge.s32.totalorder %s8, 6
    %s18 = sphi 0, %s20
    %s21 = sphi 0, %s18
    %s22 = sphi 0, %s21
    %s38 = sphi 0, %s22
    %s42 = sphi 0, %s42
    %s44 = sphi 0, %s42
    %s45 = sphi 0, %s44
    %s59 = sphi 0, %s45
    %s65 = sphi 0, %s67
    %s68 = sphi 0, %s65
    %s69 = sphi 0, %s68
    %s85 = sphi 0, %s69
  $region4: #{tpu_custom_call.1} parent=0 // loop_header_branch
    %11 = sbr.rel (%p9) target = $region8
  $region5: #{tpu_custom_call.1} parent=0 // loop_body
    %s13 = ssub.s32 %s8, 1
    %s14 = ssub.s32 %s8, 2
    %s15 = sadd.s32 %s8, 1
    %s16 = ssub.s32 %s8, %s15
    %p17 = scmp.eq.s32.totalorder %s16, 0
    %s19 = sadd.s32 %s18, 1
    %s20 = scalar_select %p17, %s18, %s19
    %p23 = pneg %p17
    %p24 = scmp.eq.s32.totalorder %s8, 3
    %p25 = por %p23, %p24
    %p26 = scmp.ne.s32.totalorder %s18, %s21
    %p27 = scmp.eq.s32.totalorder %s8, 0
    %p28 = por %p26, %p27
    %p29 = scmp.ne.s32.totalorder %s18, %s21
    %p30 = scmp.eq.s32.totalorder %s13, 3
    %p31 = por %p29, %p30
    %p32 = scmp.ne.s32.totalorder %s21, %s22
    %p33 = scmp.eq.s32.totalorder %s13, 0
    %p34 = por %p32, %p33
    %p35 = scmp.ne.s32.totalorder %s21, %s22
    %p36 = scmp.eq.s32.totalorder %s14, 3
    %p37 = por %p35, %p36
    %p39 = scmp.ne.s32.totalorder %s22, %s38
    %p40 = scmp.eq.s32.totalorder %s14, 0
    %p41 = por %p39, %p40
    %s43 = sadd.s32 %s42, 1
    %p46 = scmp.eq.s32.totalorder %s8, 3
    %p47 = scmp.ne.s32.totalorder %s42, %s44
    %p48 = scmp.eq.s32.totalorder %s8, 0
    %p49 = por %p47, %p48
    %p50 = scmp.ne.s32.totalorder %s42, %s44
    %p51 = scmp.eq.s32.totalorder %s13, 3
    %p52 = por %p50, %p51
    %p53 = scmp.ne.s32.totalorder %s44, %s45
    %p54 = scmp.eq.s32.totalorder %s13, 0
    %p55 = por %p53, %p54
    %p56 = scmp.ne.s32.totalorder %s44, %s45
    %p57 = scmp.eq.s32.totalorder %s14, 3
    %p58 = por %p56, %p57
    %p60 = scmp.ne.s32.totalorder %s45, %s59
    %p61 = scmp.eq.s32.totalorder %s14, 0
    %p62 = por %p60, %p61
    %s63 = ssub.s32 %s8, %s15
    %p64 = scmp.eq.s32.totalorder %s63, 0
    %s66 = sadd.s32 %s65, 1
    %s67 = scalar_select %p64, %s65, %s66
    %p70 = pneg %p64
    %p71 = scmp.eq.s32.totalorder %s8, 3
    %p72 = por %p70, %p71
    %p73 = scmp.ne.s32.totalorder %s65, %s68
    %p74 = scmp.eq.s32.totalorder %s8, 0
    %p75 = por %p73, %p74
    %p76 = scmp.ne.s32.totalorder %s65, %s68
    %p77 = scmp.eq.s32.totalorder %s13, 3
    %p78 = por %p76, %p77
    %p79 = scmp.ne.s32.totalorder %s68, %s69
    %p80 = scmp.eq.s32.totalorder %s13, 0
    %p81 = por %p79, %p80
    %p82 = scmp.ne.s32.totalorder %s68, %s69
    %p83 = scmp.eq.s32.totalorder %s14, 3
    %p84 = por %p82, %p83
    %p86 = scmp.ne.s32.totalorder %s69, %s85
    %p87 = scmp.eq.s32.totalorder %s14, 0
    %p88 = por %p86, %p87
    %p89 = scmp.le.s32.totalorder 1, %s8
    %p90 = scmp.lt.s32.totalorder %s8, 5
    %p91 = pnand %p89, %p90
    %p92 = pneg %p91
    // Predicated region
    $region9: #{tpu_custom_call.1} parent=5 // pred_check
      _
    $region10: #{tpu_custom_call.1} parent=5 // pred_check_branch
      %94 = sbr.rel (%p91) target = $region12
    $region11: #{tpu_custom_call.1} parent=5 // pred_region
      %s95 = ssub.s32 %s8, 1
      // Predicated region
      $region13: #{tpu_custom_call.1} parent=11 // pred_check
        %p96 = pneg %p55
      $region14: #{tpu_custom_call.1} parent=11 // pred_check_branch
        %98 = sbr.rel (%p96) target = $region16
      $region15: #{tpu_custom_call.1} parent=11 // pred_region
        _
      $region16: #{tpu_custom_call.1} parent=11 // pred_fallthru
        _
    $region12: #{tpu_custom_call.1} parent=5 // pred_fallthru
      _
    %p99 = scmp.lt.s32.totalorder %s8, 4
    // Predicated region
    $region17: #{tpu_custom_call.1} parent=5 // pred_check
      %p100 = pneg %p99
    $region18: #{tpu_custom_call.1} parent=5 // pred_check_branch
      %102 = sbr.rel (%p100) target = $region20
    $region19: #{tpu_custom_call.1} parent=5 // pred_region
      // Predicated region
      $region21: #{tpu_custom_call.1} parent=19 // pred_check
        %p103 = pneg %p28
      $region22: #{tpu_custom_call.1} parent=19 // pred_check_branch
        %105 = sbr.rel (%p103) target = $region24
      $region23: #{tpu_custom_call.1} parent=19 // pred_region
        %p106 = scmp.lt.s32.totalorder %s8, 3
        %s107 = scalar_select %p106, %s8, 3
        %s108 = smul.addr %s107, 2
        %s109 = scalar_lea.vmem %s0, %s108
      $region24: #{tpu_custom_call.1} parent=19 // pred_fallthru
        _
    $region20: #{tpu_custom_call.1} parent=5 // pred_fallthru
      _
    %p110 = scmp.le.s32.totalorder 1, %s8
    %p111 = scmp.lt.s32.totalorder %s8, 5
    %p112 = pnand %p110, %p111
    %p113 = pneg %p112
    // Predicated region
    $region25: #{tpu_custom_call.1} parent=5 // pred_check
      _
    $region26: #{tpu_custom_call.1} parent=5 // pred_check_branch
      %115 = sbr.rel (%p112) target = $region28
    $region27: #{tpu_custom_call.1} parent=5 // pred_region
      %s116 = ssub.s32 %s8, 1
      %p117 = scmp.lt.s32.totalorder %s13, 3
      %s118 = scalar_select %p117, %s13, 3
      %s119 = smul.addr %s118, 2
      %s120 = scalar_lea.vmem %s0, %s119
      %p121 = pneg %p34
      %p122 = pneg %p31
      %p123 = pneg %p55
      %p124 = pneg %p52
      %p125 = pneg %p81
      %p126 = pneg %p78
      %p127 = scmp.lt.s32.totalorder %s13, 3
      %s128 = scalar_select %p127, %s13, 3
      %s129 = scalar_lea.vmem %s2, %s128
      %p130 = scmp.lt.s32.totalorder %s13, 3
      %s131 = scalar_select %p130, %s13, 3
      %s132 = smul.addr %s131, 2
      %s133 = scalar_lea.vmem %s0, %s132
      %p134 = scmp.lt.s32.totalorder %s13, 3
      %s135 = scalar_select %p134, %s13, 3
      %s136 = scalar_lea.vmem %s2, %s135
      %v137 = vld [vmem:[%s133] sm:$0x3]
      %v138 = vld [vmem:[%s1] sm:$0xff]
      %v139 = vld [vmem:[%s1 + $0x8] sm:$0xff]
      %v140 = vld [vmem:[%s1 + $0x10] sm:$0xf]
      %v141 = vld [vmem:[%s1 + $0x18] sm:$0xff]
      %v142 = vld [vmem:[%s1 + $0x20] sm:$0xff]
      %v143 = vld [vmem:[%s1 + $0x28] sm:$0xf]
      %v144 = vld [vmem:[%s1 + $0x30] sm:$0x1]
      %v145 = vlaneseq
      %v146 = vshrl.u32 %v145, 7
      %v147 = vsub.s32 0, %v146
      %v148 = vrot.slane %v144, %v147
      %vm149 = vcmask 162816
      %v151 = vsel %vm149, %v137, 0
      %vm153 = vcmask 1043456
      %v155 = vsel %vm153, %v140, 0
      %157 = vmatprep.subr.mxu0 0.0
      %158 = vmatpush1.msra.mxu0 0.0
      %159 = vmatprep.subr.mxu0 0.0
      %160 = vmatpush1.msra.mxu0 0.0
      %161 = vmatprep.subr.mxu0 0.0
      %162 = vmatpush1.msra.mxu0 0.0
      %163 = vmatprep.subr.mxu0 0.0
      %164 = vmatpush1.msra.mxu0 0.0
      %165 = vmatprep.subr.mxu0 0.0
      %166 = vmatpush1.msra.mxu0 0.0
      %167 = vmatprep.subr.mxu0 0.0
      %168 = vmatpush1.msra.mxu0 0.0
      %169 = vmatprep.subr.mxu0 0.0
      %170 = vmatpush1.msra.mxu0 0.0
      %171 = vmatprep.subr.mxu0 0.0
      %172 = vmatpush1.msra.mxu0 0.0
      %173 = vmatprep.subr.mxu0 0.0
      %174 = vmatpush1.msra.mxu0 0.0
      %175 = vmatprep.subr.mxu0 0.0
      %176 = vmatpush1.msra.mxu0 0.0
      %177 = vmatprep.subr.mxu0 0.0
      %178 = vmatpush1.msra.mxu0 0.0
      %179 = vmatprep.subr.mxu0 0.0
      %180 = vmatpush1.msra.mxu0 0.0
      %181 = vmatprep.subr.mxu0 0.0
      %182 = vmatpush1.msra.mxu0 0.0
      %183 = vmatprep.subr.mxu0 0.0
      %184 = vmatpush1.msra.mxu0 %v155
      %185 = vmatprep.subr.mxu0 0.0
      %186 = vmatpush1.msra.mxu0 %v139
      %187 = vmatprep.subr.mxu0 0.0
      %188 = vmatpush1.msra.mxu0 %v138
      %189 = vmatprep.subr.mxu0 0.0
      %190 = vmatpush2.msra.mxu0 0.0
      %191 = vmatprep.subr.mxu0 0.0
      %192 = vmatpush2.msra.mxu0 0.0
      %193 = vmatprep.subr.mxu0 0.0
      %194 = vmatpush2.msra.mxu0 0.0
      %195 = vmatprep.subr.mxu0 0.0
      %196 = vmatpush2.msra.mxu0 0.0
      %197 = vmatprep.subr.mxu0 0.0
      %198 = vmatpush2.msra.mxu0 0.0
      %199 = vmatprep.subr.mxu0 0.0
      %200 = vmatpush2.msra.mxu0 0.0
      %201 = vmatprep.subr.mxu0 0.0
      %202 = vmatpush2.msra.mxu0 0.0
      %203 = vmatprep.subr.mxu0 0.0
      %204 = vmatpush2.msra.mxu0 0.0
      %205 = vmatprep.subr.mxu0 0.0
      %206 = vmatpush2.msra.mxu0 0.0
      %207 = vmatprep.subr.mxu0 0.0
      %208 = vmatpush2.msra.mxu0 0.0
      %209 = vmatprep.subr.mxu0 0.0
      %210 = vmatpush2.msra.mxu0 0.0
      %211 = vmatprep.subr.mxu0 0.0
      %212 = vmatpush2.msra.mxu0 0.0
      %213 = vmatprep.subr.mxu0 0.0
      %214 = vmatpush2.msra.mxu0 0.0
      %215 = vmatprep.subr.mxu0 0.0
      %216 = vmatpush2.msra.mxu0 0.0
      %217 = vmatprep.subr.mxu0 0.0
      %218 = vmatpush2.msra.mxu0 0.0
      %219 = vmatprep.subr.mxu0 0.0
      %220 = vmatpush2.msra.mxu0 0.0
      %221 = vmatprep.mubr.f32.mxu0 0.0
      %222 = vmatmul.mubr.f32.gmra.mxu0 %v151
      %v223 = vpop.f32.mrf.mxu0
      %v224 = vadd.f32 %v148, %v223
      %v225 = vpop.f32.mrf.mxu0
      %226 = vdwg.mxu0
      %v228 = vsel %vm149, %v224, 0
      %v231 = vsel %vm153, %v143, 0
      %233 = vmatprep.subr.mxu0 0.0
      %234 = vmatpush1.msra.mxu0 0.0
      %235 = vmatprep.subr.mxu0 0.0
      %236 = vmatpush1.msra.mxu0 0.0
      %237 = vmatprep.subr.mxu0 0.0
      %238 = vmatpush1.msra.mxu0 0.0
      %239 = vmatprep.subr.mxu0 0.0
      %240 = vmatpush1.msra.mxu0 0.0
      %241 = vmatprep.subr.mxu0 0.0
      %242 = vmatpush1.msra.mxu0 0.0
      %243 = vmatprep.subr.mxu0 0.0
      %244 = vmatpush1.msra.mxu0 0.0
      %245 = vmatprep.subr.mxu0 0.0
      %246 = vmatpush1.msra.mxu0 0.0
      %247 = vmatprep.subr.mxu0 0.0
      %248 = vmatpush1.msra.mxu0 0.0
      %249 = vmatprep.subr.mxu0 0.0
      %250 = vmatpush1.msra.mxu0 0.0
      %251 = vmatprep.subr.mxu0 0.0
      %252 = vmatpush1.msra.mxu0 0.0
      %253 = vmatprep.subr.mxu0 0.0
      %254 = vmatpush1.msra.mxu0 0.0
      %255 = vmatprep.subr.mxu0 0.0
      %256 = vmatpush1.msra.mxu0 0.0
      %257 = vmatprep.subr.mxu0 0.0
      %258 = vmatpush1.msra.mxu0 0.0
      %259 = vmatprep.subr.mxu0 0.0
      %260 = vmatpush1.msra.mxu0 %v231
      %261 = vmatprep.subr.mxu0 0.0
      %262 = vmatpush1.msra.mxu0 %v142
      %263 = vmatprep.subr.mxu0 0.0
      %264 = vmatpush1.msra.mxu0 %v141
      %265 = vmatprep.subr.mxu0 0.0
      %266 = vmatpush2.msra.mxu0 0.0
      %267 = vmatprep.subr.mxu0 0.0
      %268 = vmatpush2.msra.mxu0 0.0
      %269 = vmatprep.subr.mxu0 0.0
      %270 = vmatpush2.msra.mxu0 0.0
      %271 = vmatprep.subr.mxu0 0.0
      %272 = vmatpush2.msra.mxu0 0.0
      %273 = vmatprep.subr.mxu0 0.0
      %274 = vmatpush2.msra.mxu0 0.0
      %275 = vmatprep.subr.mxu0 0.0
      %276 = vmatpush2.msra.mxu0 0.0
      %277 = vmatprep.subr.mxu0 0.0
      %278 = vmatpush2.msra.mxu0 0.0
      %279 = vmatprep.subr.mxu0 0.0
      %280 = vmatpush2.msra.mxu0 0.0
      %281 = vmatprep.subr.mxu0 0.0
      %282 = vmatpush2.msra.mxu0 0.0
      %283 = vmatprep.subr.mxu0 0.0
      %284 = vmatpush2.msra.mxu0 0.0
      %285 = vmatprep.subr.mxu0 0.0
      %286 = vmatpush2.msra.mxu0 0.0
      %287 = vmatprep.subr.mxu0 0.0
      %288 = vmatpush2.msra.mxu0 0.0
      %289 = vmatprep.subr.mxu0 0.0
      %290 = vmatpush2.msra.mxu0 0.0
      %291 = vmatprep.subr.mxu0 0.0
      %292 = vmatpush2.msra.mxu0 0.0
      %293 = vmatprep.subr.mxu0 0.0
      %294 = vmatpush2.msra.mxu0 0.0
      %295 = vmatprep.subr.mxu0 0.0
      %296 = vmatpush2.msra.mxu0 0.0
      %297 = vmatprep.mubr.f32.mxu0 0.0
      %298 = vmatmul.mubr.f32.gmra.mxu0 %v228
      %v299 = vpop.f32.mrf.mxu0
      %v300 = vadd.f32 1.0, %v299
      %v301 = vpop.f32.mrf.mxu0
      %302 = vdwg.mxu0
      %v303 = vmax.f32 %v300, 0.0
      %v305 = vsel %vm149, %v303, 0
      %307 = vmatprep.subr.mxu0 0.0
      %308 = vmatpush1.msra.mxu0 0.0
      %309 = vmatprep.subr.mxu0 0.0
      %310 = vmatpush1.msra.mxu0 0.0
      %311 = vmatprep.subr.mxu0 0.0
      %312 = vmatpush1.msra.mxu0 0.0
      %313 = vmatprep.subr.mxu0 0.0
      %314 = vmatpush1.msra.mxu0 0.0
      %315 = vmatprep.subr.mxu0 0.0
      %316 = vmatpush1.msra.mxu0 0.0
      %317 = vmatprep.subr.mxu0 0.0
      %318 = vmatpush1.msra.mxu0 0.0
      %319 = vmatprep.subr.mxu0 0.0
      %320 = vmatpush1.msra.mxu0 0.0
      %321 = vmatprep.subr.mxu0 0.0
      %322 = vmatpush1.msra.mxu0 0.0
      %323 = vmatprep.subr.mxu0 0.0
      %324 = vmatpush1.msra.mxu0 0.0
      %325 = vmatprep.subr.mxu0 0.0
      %326 = vmatpush1.msra.mxu0 0.0
      %327 = vmatprep.subr.mxu0 0.0
      %328 = vmatpush1.msra.mxu0 0.0
      %329 = vmatprep.subr.mxu0 0.0
      %330 = vmatpush1.msra.mxu0 0.0
      %331 = vmatprep.subr.mxu0 0.0
      %332 = vmatpush1.msra.mxu0 0.0
      %333 = vmatprep.subr.mxu0 0.0
      %334 = vmatpush1.msra.mxu0 %v155
      %335 = vmatprep.subr.mxu0 0.0
      %336 = vmatpush1.msra.mxu0 %v139
      %337 = vmatprep.subr.mxu0 0.0
      %338 = vmatpush1.msra.mxu0 %v138
      %339 = vmatprep.subr.mxu0 0.0
      %340 = vmatpush2.msra.mxu0 0.0
      %341 = vmatprep.subr.mxu0 0.0
      %342 = vmatpush2.msra.mxu0 0.0
      %343 = vmatprep.subr.mxu0 0.0
      %344 = vmatpush2.msra.mxu0 0.0
      %345 = vmatprep.subr.mxu0 0.0
      %346 = vmatpush2.msra.mxu0 0.0
      %347 = vmatprep.subr.mxu0 0.0
      %348 = vmatpush2.msra.mxu0 0.0
      %349 = vmatprep.subr.mxu0 0.0
      %350 = vmatpush2.msra.mxu0 0.0
      %351 = vmatprep.subr.mxu0 0.0
      %352 = vmatpush2.msra.mxu0 0.0
      %353 = vmatprep.subr.mxu0 0.0
      %354 = vmatpush2.msra.mxu0 0.0
      %355 = vmatprep.subr.mxu0 0.0
      %356 = vmatpush2.msra.mxu0 0.0
      %357 = vmatprep.subr.mxu0 0.0
      %358 = vmatpush2.msra.mxu0 0.0
      %359 = vmatprep.subr.mxu0 0.0
      %360 = vmatpush2.msra.mxu0 0.0
      %361 = vmatprep.subr.mxu0 0.0
      %362 = vmatpush2.msra.mxu0 0.0
      %363 = vmatprep.subr.mxu0 0.0
      %364 = vmatpush2.msra.mxu0 0.0
      %365 = vmatprep.subr.mxu0 0.0
      %366 = vmatpush2.msra.mxu0 0.0
      %367 = vmatprep.subr.mxu0 0.0
      %368 = vmatpush2.msra.mxu0 0.0
      %369 = vmatprep.subr.mxu0 0.0
      %370 = vmatpush2.msra.mxu0 0.0
      %371 = vmatprep.mubr.f32.mxu0 0.0
      %372 = vmatmul.mubr.f32.gmra.mxu0 %v305
      %v373 = vpop.f32.mrf.mxu0
      %v374 = vadd.f32 %v148, %v373
      %v375 = vpop.f32.mrf.mxu0
      %376 = vdwg.mxu0
      %v377 = vand.u32 2147483647, %v374
      %vm378 = vcmask 156672
      %v379 = vsel %vm378, %v377, 0.0
      %380 = vadd.xlane.f32.xlu0 %v379
      %v381 = vpop.xlane.xlu0 %380
      %v382 = vrot.slane %v381, 4
      %v383 = vadd.f32 %v381, %v382
      %v384 = vrot.slane %v383, 2
      %v385 = vadd.f32 %v383, %v384
      %v386 = vrot.slane %v385, 1
      %v387 = vadd.f32 %v385, %v386
      %s388 = vtos %v387
      %v389 = vstv %s388
      %v390 = vsel %vm378, %v374, 0.0
      %391 = vadd.xlane.f32.xlu0 %v390
      %v392 = vpop.xlane.xlu0 %391
      %v393 = vrot.slane %v392, 4
      %v394 = vadd.f32 %v392, %v393
      %v395 = vrot.slane %v394, 2
      %v396 = vadd.f32 %v394, %v395
      %v397 = vrot.slane %v396, 1
      %v398 = vadd.f32 %v396, %v397
      %s399 = vtos %v398
      %v400 = vstv %s399
      %v402 = vshra.s32 %v389, 23
      %v403 = vand.u32 %v402, 255
      %v404 = vand.u32 %v389, 8388607
      %v405 = vsub.s32 %v403, 127
      %vm406 = vcmp.ne.s32.totalorder %v404, 0
      %v407 = vsel %vm406, 1, 0
      %v408 = vadd.s32 %v405, %v407
      %vm409 = vcmp.gt.s32.totalorder %v408, 0
      %v410 = vsel %vm409, %v408, 0
      %v411 = vsub.s32 127, %v410
      %v412 = vshll.u32 %v411, 23
      %v414 = vmul.f32 %v400, %v412
      %vm415 = vcmask 0
      %416 = vst.msk [vmem:[%s136] sm:$0x1] %vm415, %v414
      %p417 = scmp.lt.s32.totalorder %s13, 3
      %s418 = scalar_select %p417, %s13, 3
      %s419 = scalar_lea.vmem %s2, %s418
      // Predicated region
      $region29: #{tpu_custom_call.1} parent=27 // pred_check
        %p420 = pneg %p78
      $region30: #{tpu_custom_call.1} parent=27 // pred_check_branch
        %422 = sbr.rel (%p420) target = $region32
      $region31: #{tpu_custom_call.1} parent=27 // pred_region
        _
      $region32: #{tpu_custom_call.1} parent=27 // pred_fallthru
        _
    $region28: #{tpu_custom_call.1} parent=5 // pred_fallthru
      _
    %p423 = scmp.le.s32.totalorder 2, %s8
    // Predicated region
    $region33: #{tpu_custom_call.1} parent=5 // pred_check
      %p424 = pneg %p423
    $region34: #{tpu_custom_call.1} parent=5 // pred_check_branch
      %426 = sbr.rel (%p424) target = $region36
    $region35: #{tpu_custom_call.1} parent=5 // pred_region
      %s427 = ssub.s32 %s8, 2
      // Predicated region
      $region37: #{tpu_custom_call.1} parent=35 // pred_check
        %p428 = pneg %p84
      $region38: #{tpu_custom_call.1} parent=35 // pred_check_branch
        %430 = sbr.rel (%p428) target = $region40
      $region39: #{tpu_custom_call.1} parent=35 // pred_region
        %p431 = scmp.lt.s32.totalorder %s14, 3
        %s432 = scalar_select %p431, %s14, 3
        %s433 = scalar_lea.vmem %s2, %s432
      $region40: #{tpu_custom_call.1} parent=35 // pred_fallthru
        _
    $region36: #{tpu_custom_call.1} parent=5 // pred_fallthru
      _
  $region6: #{tpu_custom_call.1} parent=0 // loop_footer
    %s12 = sadd.s32 1, %s8
  $region7: #{tpu_custom_call.1} parent=0 // loop_footer_branch
    %7 = sbr.rel target = $region3
  $region8: #{tpu_custom_call.1} parent=0 // loop_exit
    _

</llo_original>
